<compile_context>
chip_gen: v6e
topology: v6e:2x2x1
jax: 0.10.0
libtpu: 0.0.40
codegen_flags: <defaults>
</compile_context>

<pallas_src>
import functools

import jax
import jax.numpy as jnp
from jax.experimental import pallas as pl
from jax.experimental.pallas import tpu as pltpu


def _round_up(x, m):
    return pl.cdiv(x, m) * m


# ---------------------------------------------------------------------------
# Kernels
# ---------------------------------------------------------------------------
def _fused_resident_kernel(base_ref, source_ref, m_ref, o_ref):
    """o = base + (source - base) @ M, with M fully resident in VMEM."""
    base = base_ref[...]                                            # (tb, Dp)
    delta = (source_ref[...] - base).astype(m_ref.dtype)            # VPU, co-issues
    upd = jnp.dot(delta, m_ref[...], preferred_element_type=jnp.float32)
    o_ref[...] = (base.astype(jnp.float32) + upd).astype(o_ref.dtype)


def _fused_ktiled_kernel(base_full_ref, base_k_ref, source_k_ref, m_ref,
                         o_ref, acc_ref):
    """K-tiled variant: M streamed in (tk, Dp) slabs; f32 accumulator scratch."""
    k = pl.program_id(1)

    @pl.when(k == 0)
    def _init():
        acc_ref[...] = base_full_ref[...].astype(jnp.float32)

    delta = (source_k_ref[...] - base_k_ref[...]).astype(m_ref.dtype)  # (tb, tk)
    acc_ref[...] += jnp.dot(delta, m_ref[...], preferred_element_type=jnp.float32)

    @pl.when(k == pl.num_programs(1) - 1)
    def _store():
        o_ref[...] = acc_ref[...].astype(o_ref.dtype)


# ---------------------------------------------------------------------------
# VMEM working-set estimates (double-buffered BlockSpec tiles + temporaries)
# ---------------------------------------------------------------------------
def _resident_vmem_bytes(tb, Dp, in_b, out_b, m_b, m_bufs):
    tiles = 2 * (2 * tb * Dp * in_b)          # base + source, double-buffered
    outb = 2 * tb * Dp * out_b                # output, double-buffered
    m = m_bufs * Dp * Dp * m_b                # fused M (1 buf when Buffered(1))
    temps = 2 * tb * Dp * 4                   # delta + f32 matmul result
    return tiles + outb + m + temps


def _ktiled_vmem_bytes(tb, tk, Dp, in_b, out_b, m_b):
    m = 2 * tk * Dp * m_b                     # M slabs, double-buffered
    base_full = 2 * tb * Dp * in_b
    base_k = 2 * tb * tk * in_b
    src_k = 2 * tb * tk * in_b
    outb = 2 * tb * Dp * out_b
    acc = tb * Dp * 4
    temps = tb * Dp * 4 + tb * tk * 4
    return m + base_full + base_k + src_k + outb + acc + temps


# ---------------------------------------------------------------------------
# Wrapper
# ---------------------------------------------------------------------------
@functools.partial(jax.jit,
                   static_argnames=("tb_max", "tk", "matmul_dtype", "force_ktiled"))
def boundless_rotated_space_intervention(base, source, rot, mask_boundaries,
                                         temperature, *, tb_max=512, tk=512,
                                         matmul_dtype=None, force_ktiled=None):
    """base, source: (B, D); rot: (D, D) orthogonal; mask_boundaries: (D,);
    temperature: scalar.  (The torch forward's `batch_size` arg is unused there.)

    matmul_dtype=jnp.bfloat16 halves M's VMEM footprint and feeds the bf16 MXU
    at full rate (recommended on v7x for large D); accumulation stays f32.
    NOTE: the fused form relies on R @ R.T == I, which the module's orthogonal
    parametrization guarantees.
    """
    B, D = base.shape
    out_dtype = base.dtype
    md = jnp.dtype(rot.dtype if matmul_dtype is None else matmul_dtype)

    # ---- grid-invariant precompute, hoisted out of the kernel --------------
    hp = jax.lax.Precision.HIGHEST
    mask = jax.nn.sigmoid(mask_boundaries.astype(jnp.float32)
                          / jnp.asarray(temperature, jnp.float32))        # (D,)
    rot32 = rot.astype(jnp.float32)
    # M = R @ diag(mask) @ R.T, one-time D^3 precompute in XLA.
    M = jnp.dot(rot32 * mask[None, :], rot32.T, precision=hp).astype(md)  # (D, D)

    in_b = jnp.dtype(base.dtype).itemsize
    out_b = jnp.dtype(out_dtype).itemsize
    m_b = md.itemsize

    # ---- generation-aware VMEM budget --------------------------------------
    try:
        vmem_phys = int(pltpu.get_tpu_info().vmem_capacity_bytes)
    except Exception:
        vmem_phys = 128 * 1024 * 1024
    # ~100 MiB on 128-MiB chips (v5e/v6e), ~50 MiB on v7x (64 MiB / TC).
    vmem_limit = min(int(vmem_phys * 0.78), 100 * 1024 * 1024)
    budget = int(vmem_limit * 0.9)

    # Single-buffer grid-invariant inputs if this JAX exposes pipeline_mode.
    try:
        pl.BlockSpec((8, 128), lambda i: (0, 0), pipeline_mode=pl.Buffered(1))
        single_buffer_m = True
    except Exception:
        single_buffer_m = False

    # ---- tiling -------------------------------------------------------------
    Dp = _round_up(D, 128)                          # lane-dense last dim
    if force_ktiled is None:
        use_ktiled = Dp * Dp * m_b > budget // 2    # M too big to keep resident
    else:
        use_ktiled = bool(force_ktiled)

    tk_ = Dp
    if use_ktiled:
        tk_ = _round_up(min(tk, Dp), 128)
        Dp = _round_up(Dp, tk_)                     # K grid must divide evenly
    dpad = Dp - D

    Bp0 = _round_up(B, 8)
    tb = _round_up(min(tb_max, Bp0), 8)
    # v7x has two TensorCores: keep >= 2 steps on the "parallel" batch axis.
    if Bp0 > 8 and pl.cdiv(Bp0, tb) < 2:
        tb = max(8, _round_up(pl.cdiv(Bp0, 2), 8))
    # Shrink the batch tile until the double-buffered working set fits VMEM.
    if use_ktiled:
        est = lambda t: _ktiled_vmem_bytes(t, tk_, Dp, in_b, out_b, m_b)
    else:
        est = lambda t: _resident_vmem_bytes(t, Dp, in_b, out_b, m_b,
                                             1 if single_buffer_m else 2)
    while tb > 8 and est(tb) > budget:
        tb = max(8, _round_up(tb // 2, 8))

    Bp = _round_up(B, tb)
    bpad = Bp - B

    # ---- pad only when needed (avoid extra HBM passes over base/source) ----
    if bpad or dpad:
        base_p = jnp.pad(base, ((0, bpad), (0, dpad)))
        source_p = jnp.pad(source, ((0, bpad), (0, dpad)))
    else:
        base_p, source_p = base, source
    M_p = jnp.pad(M, ((0, dpad), (0, dpad))) if dpad else M

    cost = pl.CostEstimate(
        flops=int(2 * Bp * Dp * Dp),
        bytes_accessed=int(2 * Bp * Dp * in_b + Bp * Dp * out_b + Dp * Dp * m_b),
        transcendentals=0)

    if not use_ktiled:
        m_kwargs = {"pipeline_mode": pl.Buffered(1)} if single_buffer_m else {}
        out_p = pl.pallas_call(
            _fused_resident_kernel,
            out_shape=jax.ShapeDtypeStruct((Bp, Dp), out_dtype),
            grid=(Bp // tb,),
            in_specs=[
                pl.BlockSpec((tb, Dp), lambda i: (i, 0)),               # base
                pl.BlockSpec((tb, Dp), lambda i: (i, 0)),               # source
                pl.BlockSpec((Dp, Dp), lambda i: (0, 0), **m_kwargs),   # fused M
            ],
            out_specs=pl.BlockSpec((tb, Dp), lambda i: (i, 0)),
            compiler_params=pltpu.CompilerParams(
                dimension_semantics=("parallel",),
                vmem_limit_bytes=vmem_limit),
            cost_estimate=cost,
        )(base_p, source_p, M_p)
    else:
        nk = Dp // tk_
        out_p = pl.pallas_call(
            _fused_ktiled_kernel,
            out_shape=jax.ShapeDtypeStruct((Bp, Dp), out_dtype),
            grid=(Bp // tb, nk),
            in_specs=[
                pl.BlockSpec((tb, Dp), lambda i, k: (i, 0)),    # base, full width
                pl.BlockSpec((tb, tk_), lambda i, k: (i, k)),   # base, K slice
                pl.BlockSpec((tb, tk_), lambda i, k: (i, k)),   # source, K slice
                pl.BlockSpec((tk_, Dp), lambda i, k: (k, 0)),   # M, K slab
            ],
            out_specs=pl.BlockSpec((tb, Dp), lambda i, k: (i, 0)),
            scratch_shapes=[pltpu.VMEM((tb, Dp), jnp.float32)],
            compiler_params=pltpu.CompilerParams(
                dimension_semantics=("parallel", "arbitrary"),
                vmem_limit_bytes=vmem_limit),
            cost_estimate=cost,
        )(base_p, base_p, source_p, M_p)

    return out_p[:B, :D]


# ---------------------------------------------------------------------------
# Reference (mirrors the torch forward, full-precision matmuls)
# ---------------------------------------------------------------------------
def _reference(base, source, rot, mask_boundaries, temperature):
    hp = jax.lax.Precision.HIGHEST
    rb = jnp.dot(base, rot, precision=hp)
    rs = jnp.dot(source, rot, precision=hp)
    mask = jax.nn.sigmoid(mask_boundaries / temperature)[None, :]
    ro = (1.0 - mask) * rb + mask * rs
    return jnp.dot(ro, rot.T, precision=hp).astype(base.dtype)


if __name__ == "__main__":
    key = jax.random.PRNGKey(0)
    k_b1, k_s1, k_r1, k_b2, k_s2, k_r2 = jax.random.split(key, 6)

    def make_inputs(kb, ks, kr, batch, embed_dim):
        # Deterministic parameter init mirroring the module __init__:
        #  - rotate_layer weight: (D, D) orthogonal (QR of a random normal)
        #  - mask_boundaries: (D,) filled with 500.0 ; temperature: 50.0
        rot, _ = jnp.linalg.qr(
            jax.random.normal(kr, (embed_dim, embed_dim), dtype=jnp.float32))
        mask_boundaries = jnp.full((embed_dim,), 500.0, dtype=jnp.float32)
        temperature = jnp.asarray(50.0, dtype=jnp.float32)
        base = jax.random.normal(kb, (batch, embed_dim), dtype=jnp.float32)
        source = jax.random.normal(ks, (batch, embed_dim), dtype=jnp.float32)
        return base, source, rot, mask_boundaries, temperature

    # Case 1: small shapes — resident-M path, lane padding (32 -> 128),
    # 2-step parallel batch grid.
    args1 = make_inputs(k_b1, k_s1, k_r1, batch=16, embed_dim=32)
    out1 = jax.block_until_ready(boundless_rotated_space_intervention(*args1))
    ref1 = _reference(*args1)
    assert out1.shape == args1[0].shape and out1.dtype == args1[0].dtype
    assert jnp.allclose(out1, ref1, rtol=2e-4, atol=2e-4), \
        float(jnp.max(jnp.abs(out1 - ref1)))

    # Case 2: ragged shapes — forces the K-tiled accumulator path (2x2 grid),
    # exercising batch + lane padding and the multi-step reduction axis.
    args2 = make_inputs(k_b2, k_s2, k_r2, batch=52, embed_dim=200)
    out2 = jax.block_until_ready(
        boundless_rotated_space_intervention(*args2, tk=128, force_ktiled=True))
    ref2 = _reference(*args2)
    assert out2.shape == args2[0].shape and out2.dtype == args2[0].dtype
    assert jnp.allclose(out2, ref2, rtol=2e-4, atol=2e-4), \
        float(jnp.max(jnp.abs(out2 - ref2)))

    # TODO(synk): the module's set_temperature / set_mask_boundaries mutators are
    # host-side parameter management and are not part of the kernel forward.
    print("KERNEL_OK")
</pallas_src>

<mosaic_0001>
module attributes {stable_mosaic.version = 11 : i64} {
  func.func @_fused_resident_kernel(%arg0: i32, %arg1: memref<8x128xf32, #tpu.memory_space<vmem>>, %arg2: memref<8x128xf32, #tpu.memory_space<vmem>>, %arg3: memref<128x128xf32, #tpu.memory_space<vmem>>, %arg4: memref<8x128xf32, #tpu.memory_space<vmem>>) attributes {dimension_semantics = [#tpu.dimension_semantics<parallel>], iteration_bounds = array<i64: 2>, scalar_prefetch = 0 : i64, scratch_operands = 0 : i64, tpu.core_type = #tpu.core_type<tc>, window_params = [{transform_indices = @transform_0, window_bounds = array<i64: 8, 128>}, {transform_indices = @transform_1, window_bounds = array<i64: 8, 128>}, {pipeline_mode = #tpu.pipeline_mode<synchronous>, transform_indices = @transform_2, window_bounds = array<i64: 128, 128>}, {transform_indices = @transform_3, window_bounds = array<i64: 8, 128>}]} {
    %c0 = arith.constant 0 : index
    %c0_0 = arith.constant 0 : index
    %0 = vector.load %arg1[%c0, %c0_0] : memref<8x128xf32, #tpu.memory_space<vmem>>, vector<8x128xf32>
    %c0_1 = arith.constant 0 : index
    %c0_2 = arith.constant 0 : index
    %1 = vector.load %arg2[%c0_1, %c0_2] : memref<8x128xf32, #tpu.memory_space<vmem>>, vector<8x128xf32>
    %2 = arith.subf %1, %0 : vector<8x128xf32>
    %c0_3 = arith.constant 0 : index
    %c0_4 = arith.constant 0 : index
    %3 = vector.load %arg3[%c0_3, %c0_4] : memref<128x128xf32, #tpu.memory_space<vmem>>, vector<128x128xf32>
    %cst = arith.constant dense<0.000000e+00> : vector<8x128xf32>
    %4 = tpu.matmul %2, %3, %cst {dimension_numbers = #tpu.dot_dimension_numbers<[1], [0], [0], [1], [0, 0, 1, 1], [], []>} : vector<8x128xf32>, vector<128x128xf32>, vector<8x128xf32> -> vector<8x128xf32>
    %5 = arith.addf %0, %4 : vector<8x128xf32>
    %c0_5 = arith.constant 0 : index
    %c0_6 = arith.constant 0 : index
    %6 = vector.load %arg4[%c0_5, %c0_6] : memref<8x128xf32, #tpu.memory_space<vmem>>, vector<8x128xf32>
    tpu.vector_store %arg4[%c0_5, %c0_6], %5 {strides = array<i32>} : memref<8x128xf32, #tpu.memory_space<vmem>>, vector<8x128xf32>,
    return
  }
  func.func @transform_0(%arg0: i32) -> (i32, i32) {
    %c0_i32 = arith.constant 0 : i32
    %c0_i32_0 = arith.constant 0 : i32
    return %arg0, %c0_i32 : i32, i32
  }
  func.func @transform_1(%arg0: i32) -> (i32, i32) {
    %c0_i32 = arith.constant 0 : i32
    %c0_i32_0 = arith.constant 0 : i32
    return %arg0, %c0_i32 : i32, i32
  }
  func.func @transform_2(%arg0: i32) -> (i32, i32) {
    %c0_i32 = arith.constant 0 : i32
    %c0_i32_0 = arith.constant 0 : i32
    %c0_i32_1 = arith.constant 0 : i32
    return %c0_i32, %c0_i32_0 : i32, i32
  }
  func.func @transform_3(%arg0: i32) -> (i32, i32) {
    %c0_i32 = arith.constant 0 : i32
    %c0_i32_0 = arith.constant 0 : i32
    return %arg0, %c0_i32 : i32, i32
  }
}

</mosaic_0001>

<llo_original>
// kernel: boundless_rotated_space_intervention.1
$region0: #{boundless_rotated_space_intervention.1}
  #allocation0 [shape = 'u32[]', space=smem, size = 0x4, offset = 0x4, fixed_abs, tag = 'smem constant byte address 0x4 - core index']
  #allocation1 [shape = 'u32[144,128]{1,0:T(1,128)}', space=vmem, size = 0x12000, scoped, tag = 'internal scratch']
  %s0 = inlined_call_operand.vmem [shape: f32[16,128], index: 0, kind: input, shape index: {}]
  %s1 = inlined_call_operand.vmem [shape: f32[16,128], index: 1, kind: input, shape index: {}]
  %s2 = inlined_call_operand.vmem [shape: f32[128,128], index: 2, kind: input, shape index: {}]
  %s3 = inlined_call_operand.hbm [shape: f32[16,128], index: 3, kind: output, shape index: {}]
  %s4 = sld [smem:[#allocation0]]
  $region45: #{boundless_rotated_space_intervention.1} parent=0
    _
  %s6 = ssub.s32 1, %s4
  %s7 = scalar_select 0, %s6, %s4
  $region1: #{boundless_rotated_space_intervention.1} parent=0
    #allocation2 [shape = 'u8[8192]{0}', space=vmem, size = 0x2000, scoped, tag = 'output window, operand 0']
    #allocation3 [shape = 's32[2]{0}', space=sflag, size = 0x8, scoped, tag = 'scoped memory for boundless_rotated_space_intervention.1']
    %8 = vsyncpa [#allocation3], 0
    %s9 = scalar_lea.sflag [#allocation3], 1
    %10 = vsyncpa %s9, 0
    loop: start=0, step=1, limit=4
    $region2: #{boundless_rotated_space_intervention.1} parent=1 // loop_pre_header
      _
    $region3: #{boundless_rotated_space_intervention.1} parent=1 // loop_header
      %s12 = sphi 0, %s16
      %p13 = scmp.ge.s32.totalorder %s12, 4
      %s22 = sphi 0, %s24
      %s25 = sphi 0, %s22
      %s26 = sphi 0, %s25
      %s42 = sphi 0, %s26
      %s48 = sphi 0, %s50
      %s51 = sphi 0, %s48
      %s52 = sphi 0, %s51
      %s68 = sphi 0, %s52
      %s72 = sphi 0, %s72
      %s74 = sphi 0, %s72
      %s75 = sphi 0, %s74
      %s89 = sphi 0, %s75
      %s95 = sphi 0, %s97
      %s98 = sphi 0, %s95
      %s99 = sphi 0, %s98
      %s115 = sphi 0, %s99
    $region4: #{boundless_rotated_space_intervention.1} parent=1 // loop_header_branch
      %15 = sbr.rel (%p13) target = $region8
    $region5: #{boundless_rotated_space_intervention.1} parent=1 // loop_body
      %s17 = ssub.s32 %s12, 1
      %s18 = ssub.s32 %s12, 2
      %s19 = sadd.s32 %s12, 1
      %s20 = ssub.s32 %s12, %s19
      %p21 = scmp.eq.s32.totalorder %s20, 0
      %s23 = sadd.s32 %s22, 1
      %s24 = scalar_select %p21, %s22, %s23
      %p27 = pneg %p21
      %p28 = scmp.eq.s32.totalorder %s12, 1
      %p29 = por %p27, %p28
      %p30 = scmp.ne.s32.totalorder %s22, %s25
      %p31 = scmp.eq.s32.totalorder %s12, 0
      %p32 = por %p30, %p31
      %p33 = scmp.ne.s32.totalorder %s22, %s25
      %p34 = scmp.eq.s32.totalorder %s17, 1
      %p35 = por %p33, %p34
      %p36 = scmp.ne.s32.totalorder %s25, %s26
      %p37 = scmp.eq.s32.totalorder %s17, 0
      %p38 = por %p36, %p37
      %p39 = scmp.ne.s32.totalorder %s25, %s26
      %p40 = scmp.eq.s32.totalorder %s18, 1
      %p41 = por %p39, %p40
      %p43 = scmp.ne.s32.totalorder %s26, %s42
      %p44 = scmp.eq.s32.totalorder %s18, 0
      %p45 = por %p43, %p44
      %s46 = ssub.s32 %s12, %s19
      %p47 = scmp.eq.s32.totalorder %s46, 0
      %s49 = sadd.s32 %s48, 1
      %s50 = scalar_select %p47, %s48, %s49
      %p53 = pneg %p47
      %p54 = scmp.eq.s32.totalorder %s12, 1
      %p55 = por %p53, %p54
      %p56 = scmp.ne.s32.totalorder %s48, %s51
      %p57 = scmp.eq.s32.totalorder %s12, 0
      %p58 = por %p56, %p57
      %p59 = scmp.ne.s32.totalorder %s48, %s51
      %p60 = scmp.eq.s32.totalorder %s17, 1
      %p61 = por %p59, %p60
      %p62 = scmp.ne.s32.totalorder %s51, %s52
      %p63 = scmp.eq.s32.totalorder %s17, 0
      %p64 = por %p62, %p63
      %p65 = scmp.ne.s32.totalorder %s51, %s52
      %p66 = scmp.eq.s32.totalorder %s18, 1
      %p67 = por %p65, %p66
      %p69 = scmp.ne.s32.totalorder %s52, %s68
      %p70 = scmp.eq.s32.totalorder %s18, 0
      %p71 = por %p69, %p70
      %s73 = sadd.s32 %s72, 1
      %p76 = scmp.eq.s32.totalorder %s12, 1
      %p77 = scmp.ne.s32.totalorder %s72, %s74
      %p78 = scmp.eq.s32.totalorder %s12, 0
      %p79 = por %p77, %p78
      %p80 = scmp.ne.s32.totalorder %s72, %s74
      %p81 = scmp.eq.s32.totalorder %s17, 1
      %p82 = por %p80, %p81
      %p83 = scmp.ne.s32.totalorder %s74, %s75
      %p84 = scmp.eq.s32.totalorder %s17, 0
      %p85 = por %p83, %p84
      %p86 = scmp.ne.s32.totalorder %s74, %s75
      %p87 = scmp.eq.s32.totalorder %s18, 1
      %p88 = por %p86, %p87
      %p90 = scmp.ne.s32.totalorder %s75, %s89
      %p91 = scmp.eq.s32.totalorder %s18, 0
      %p92 = por %p90, %p91
      %s93 = ssub.s32 %s12, %s19
      %p94 = scmp.eq.s32.totalorder %s93, 0
      %s96 = sadd.s32 %s95, 1
      %s97 = scalar_select %p94, %s95, %s96
      %p100 = pneg %p94
      %p101 = scmp.eq.s32.totalorder %s12, 1
      %p102 = por %p100, %p101
      %p103 = scmp.ne.s32.totalorder %s95, %s98
      %p104 = scmp.eq.s32.totalorder %s12, 0
      %p105 = por %p103, %p104
      %p106 = scmp.ne.s32.totalorder %s95, %s98
      %p107 = scmp.eq.s32.totalorder %s17, 1
      %p108 = por %p106, %p107
      %p109 = scmp.ne.s32.totalorder %s98, %s99
      %p110 = scmp.eq.s32.totalorder %s17, 0
      %p111 = por %p109, %p110
      %p112 = scmp.ne.s32.totalorder %s98, %s99
      %p113 = scmp.eq.s32.totalorder %s18, 1
      %p114 = por %p112, %p113
      %p116 = scmp.ne.s32.totalorder %s99, %s115
      %p117 = scmp.eq.s32.totalorder %s18, 0
      %p118 = por %p116, %p117
      %p119 = scmp.le.s32.totalorder 1, %s12
      %p120 = scmp.lt.s32.totalorder %s12, 3
      %p121 = pnand %p119, %p120
      %p122 = pneg %p121
      // Predicated region
      $region9: #{boundless_rotated_space_intervention.1} parent=5 // pred_check
        _
      $region10: #{boundless_rotated_space_intervention.1} parent=5 // pred_check_branch
        %124 = sbr.rel (%p121) target = $region12
      $region11: #{boundless_rotated_space_intervention.1} parent=5 // pred_region
        %s125 = ssub.s32 %s12, 1
        // Predicated region
        $region13: #{boundless_rotated_space_intervention.1} parent=11 // pred_check
          %p126 = pneg %p85
        $region14: #{boundless_rotated_space_intervention.1} parent=11 // pred_check_branch
          %128 = sbr.rel (%p126) target = $region16
        $region15: #{boundless_rotated_space_intervention.1} parent=11 // pred_region
          _
        $region16: #{boundless_rotated_space_intervention.1} parent=11 // pred_fallthru
          _
      $region12: #{boundless_rotated_space_intervention.1} parent=5 // pred_fallthru
        _
      %p129 = scmp.lt.s32.totalorder %s12, 2
      // Predicated region
      $region17: #{boundless_rotated_space_intervention.1} parent=5 // pred_check
        %p130 = pneg %p129
      $region18: #{boundless_rotated_space_intervention.1} parent=5 // pred_check_branch
        %132 = sbr.rel (%p130) target = $region20
      $region19: #{boundless_rotated_space_intervention.1} parent=5 // pred_region
        // Predicated region
        $region21: #{boundless_rotated_space_intervention.1} parent=19 // pred_check
          %p133 = pneg %p32
        $region22: #{boundless_rotated_space_intervention.1} parent=19 // pred_check_branch
          %135 = sbr.rel (%p133) target = $region24
        $region23: #{boundless_rotated_space_intervention.1} parent=19 // pred_region
          %p136 = scmp.lt.s32.totalorder %s12, 1
          %s137 = scalar_select %p136, %s12, 1
          %s138 = smul.addr %s137, 8
          %s139 = scalar_lea.vmem %s0, %s138
        $region24: #{boundless_rotated_space_intervention.1} parent=19 // pred_fallthru
          _
        // Predicated region
        $region25: #{boundless_rotated_space_intervention.1} parent=19 // pred_check
          %p140 = pneg %p58
        $region26: #{boundless_rotated_space_intervention.1} parent=19 // pred_check_branch
          %142 = sbr.rel (%p140) target = $region28
        $region27: #{boundless_rotated_space_intervention.1} parent=19 // pred_region
          %p143 = scmp.lt.s32.totalorder %s12, 1
          %s144 = scalar_select %p143, %s12, 1
          %s145 = smul.addr %s144, 8
          %s146 = scalar_lea.vmem %s1, %s145
        $region28: #{boundless_rotated_space_intervention.1} parent=19 // pred_fallthru
          _
      $region20: #{boundless_rotated_space_intervention.1} parent=5 // pred_fallthru
        _
      %p147 = scmp.le.s32.totalorder 1, %s12
      %p148 = scmp.lt.s32.totalorder %s12, 3
      %p149 = pnand %p147, %p148
      %p150 = pneg %p149
      // Predicated region
      $region29: #{boundless_rotated_space_intervention.1} parent=5 // pred_check
        _
      $region30: #{boundless_rotated_space_intervention.1} parent=5 // pred_check_branch
        %152 = sbr.rel (%p149) target = $region32
      $region31: #{boundless_rotated_space_intervention.1} parent=5 // pred_region
        %s153 = ssub.s32 %s12, 1
        %p154 = scmp.lt.s32.totalorder %s17, 1
        %s155 = scalar_select %p154, %s17, 1
        %s156 = smul.addr %s155, 8
        %s157 = scalar_lea.vmem %s0, %s156
        %p158 = pneg %p38
        %p159 = pneg %p35
        %p160 = scmp.lt.s32.totalorder %s17, 1
        %s161 = scalar_select %p160, %s17, 1
        %s162 = smul.addr %s161, 8
        %s163 = scalar_lea.vmem %s1, %s162
        %p164 = pneg %p64
        %p165 = pneg %p61
        %p166 = pneg %p85
        %p167 = pneg %p82
        %p168 = pneg %p111
        %p169 = pneg %p108
        %s170 = sand.u32 %s98, 1
        %s171 = scalar_lea.sflag [#allocation3], %s170
        %s172 = sand.u32 %s98, 1
        %s173 = smul.addr %s172, 8
        %s174 = scalar_lea.vmem [#allocation2], %s173
        %p175 = scmp.lt.s32.totalorder %s17, 1
        %s176 = scalar_select %p175, %s17, 1
        %s177 = smul.addr %s176, 8
        %s178 = scalar_lea.vmem %s0, %s177
        %p179 = scmp.lt.s32.totalorder %s17, 1
        %s180 = scalar_select %p179, %s17, 1
        %s181 = smul.addr %s180, 8
        %s182 = scalar_lea.vmem %s1, %s181
        %v183 = vld [vmem:[%s178] sm:$0xff]
        %v184 = vld [vmem:[%s182] sm:$0xff]
        %v185 = vsub.f32 %v184, %v183
        %v186 = vld [vmem:[%s2] sm:$0xff]
        %v187 = vld [vmem:[%s2 + $0x8] sm:$0xff]
        %v188 = vld [vmem:[%s2 + $0x10] sm:$0xff]
        %v189 = vld [vmem:[%s2 + $0x18] sm:$0xff]
        %v190 = vld [vmem:[%s2 + $0x20] sm:$0xff]
        %v191 = vld [vmem:[%s2 + $0x28] sm:$0xff]
        %v192 = vld [vmem:[%s2 + $0x30] sm:$0xff]
        %v193 = vld [vmem:[%s2 + $0x38] sm:$0xff]
        %v194 = vld [vmem:[%s2 + $0x40] sm:$0xff]
        %v195 = vld [vmem:[%s2 + $0x48] sm:$0xff]
        %v196 = vld [vmem:[%s2 + $0x50] sm:$0xff]
        %v197 = vld [vmem:[%s2 + $0x58] sm:$0xff]
        %v198 = vld [vmem:[%s2 + $0x60] sm:$0xff]
        %v199 = vld [vmem:[%s2 + $0x68] sm:$0xff]
        %v200 = vld [vmem:[%s2 + $0x70] sm:$0xff]
        %v201 = vld [vmem:[%s2 + $0x78] sm:$0xff]
        %202 = vmatprep.subr.mxu0 0.0
        %203 = vmatpush1.msra.mxu0 %v201
        %204 = vmatprep.subr.mxu0 0.0
        %205 = vmatpush1.msra.mxu0 %v200
        %206 = vmatprep.subr.mxu0 0.0
        %207 = vmatpush1.msra.mxu0 %v199
        %208 = vmatprep.subr.mxu0 0.0
        %209 = vmatpush1.msra.mxu0 %v198
        %210 = vmatprep.subr.mxu0 0.0
        %211 = vmatpush1.msra.mxu0 %v197
        %212 = vmatprep.subr.mxu0 0.0
        %213 = vmatpush1.msra.mxu0 %v196
        %214 = vmatprep.subr.mxu0 0.0
        %215 = vmatpush1.msra.mxu0 %v195
        %216 = vmatprep.subr.mxu0 0.0
        %217 = vmatpush1.msra.mxu0 %v194
        %218 = vmatprep.subr.mxu0 0.0
        %219 = vmatpush1.msra.mxu0 %v193
        %220 = vmatprep.subr.mxu0 0.0
        %221 = vmatpush1.msra.mxu0 %v192
        %222 = vmatprep.subr.mxu0 0.0
        %223 = vmatpush1.msra.mxu0 %v191
        %224 = vmatprep.subr.mxu0 0.0
        %225 = vmatpush1.msra.mxu0 %v190
        %226 = vmatprep.subr.mxu0 0.0
        %227 = vmatpush1.msra.mxu0 %v189
        %228 = vmatprep.subr.mxu0 0.0
        %229 = vmatpush1.msra.mxu0 %v188
        %230 = vmatprep.subr.mxu0 0.0
        %231 = vmatpush1.msra.mxu0 %v187
        %232 = vmatprep.subr.mxu0 0.0
        %233 = vmatpush1.msra.mxu0 %v186
        %234 = vmatprep.subr.mxu0 0.0
        %235 = vmatpush2.msra.mxu0 0.0
        %236 = vmatprep.subr.mxu0 0.0
        %237 = vmatpush2.msra.mxu0 0.0
        %238 = vmatprep.subr.mxu0 0.0
        %239 = vmatpush2.msra.mxu0 0.0
        %240 = vmatprep.subr.mxu0 0.0
        %241 = vmatpush2.msra.mxu0 0.0
        %242 = vmatprep.subr.mxu0 0.0
        %243 = vmatpush2.msra.mxu0 0.0
        %244 = vmatprep.subr.mxu0 0.0
        %245 = vmatpush2.msra.mxu0 0.0
        %246 = vmatprep.subr.mxu0 0.0
        %247 = vmatpush2.msra.mxu0 0.0
        %248 = vmatprep.subr.mxu0 0.0
        %249 = vmatpush2.msra.mxu0 0.0
        %250 = vmatprep.subr.mxu0 0.0
        %251 = vmatpush2.msra.mxu0 0.0
        %252 = vmatprep.subr.mxu0 0.0
        %253 = vmatpush2.msra.mxu0 0.0
        %254 = vmatprep.subr.mxu0 0.0
        %255 = vmatpush2.msra.mxu0 0.0
        %256 = vmatprep.subr.mxu0 0.0
        %257 = vmatpush2.msra.mxu0 0.0
        %258 = vmatprep.subr.mxu0 0.0
        %259 = vmatpush2.msra.mxu0 0.0
        %260 = vmatprep.subr.mxu0 0.0
        %261 = vmatpush2.msra.mxu0 0.0
        %262 = vmatprep.subr.mxu0 0.0
        %263 = vmatpush2.msra.mxu0 0.0
        %264 = vmatprep.subr.mxu0 0.0
        %265 = vmatpush2.msra.mxu0 0.0
        %266 = vmatprep.mubr.f32.mxu0 0.0
        %267 = vmatmul.mubr.f32.gmra.mxu0 %v185
        %v268 = vpop.f32.mrf.mxu0
        %v269 = vadd.f32 0.0, %v268
        %v270 = vpop.f32.mrf.mxu0
        %271 = vdwg.mxu0
        %v272 = vadd.f32 %v183, %v269
        %273 = vst [vmem:[%s174] sm:$0xff] %v272
        %s274 = sand.u32 %s98, 1
        %s275 = scalar_lea.sflag [#allocation3], %s274
        %s276 = sand.u32 %s98, 1
        %s277 = smul.addr %s276, 8
        %s278 = scalar_lea.vmem [#allocation2], %s277
        // Predicated region
        $region33: #{boundless_rotated_space_intervention.1} parent=31 // pred_check
          %p279 = pneg %p108
        $region34: #{boundless_rotated_space_intervention.1} parent=31 // pred_check_branch
          %281 = sbr.rel (%p279) target = $region36
        $region35: #{boundless_rotated_space_intervention.1} parent=31 // pred_region
          %s283 = ssub.s32 128, 128
          %284 = vsyncadd %s275, %s283
          %s285 = smul.addr %s17, 128
          %s286 = scalar_lea.hbm %s3, %s285
          %s288 = sshll.u32 %s278, 4
          %s289 = int_to_ptr.vmem [resolvable:$true] %s288
          %291 = dma.vmem_to_hbm [thread:$0]  %s289, 128, %s286, %s275
        $region36: #{boundless_rotated_space_intervention.1} parent=31 // pred_fallthru
          _
      $region32: #{boundless_rotated_space_intervention.1} parent=5 // pred_fallthru
        _
      %p292 = scmp.le.s32.totalorder 2, %s12
      // Predicated region
      $region37: #{boundless_rotated_space_intervention.1} parent=5 // pred_check
        %p293 = pneg %p292
      $region38: #{boundless_rotated_space_intervention.1} parent=5 // pred_check_branch
        %295 = sbr.rel (%p293) target = $region40
      $region39: #{boundless_rotated_space_intervention.1} parent=5 // pred_region
        %s296 = ssub.s32 %s12, 2
        // Predicated region
        $region41: #{boundless_rotated_space_intervention.1} parent=39 // pred_check
          %p297 = pneg %p114
        $region42: #{boundless_rotated_space_intervention.1} parent=39 // pred_check_branch
          %299 = sbr.rel (%p297) target = $region44
        $region43: #{boundless_rotated_space_intervention.1} parent=39 // pred_region
          %s300 = sand.u32 %s99, 1
          %s301 = scalar_lea.sflag [#allocation3], %s300
          %s302 = sand.u32 %s99, 1
          %s303 = smul.addr %s302, 8
          %s304 = scalar_lea.vmem [#allocation2], %s303
          %305 = dma.done %s301, 128
        $region44: #{boundless_rotated_space_intervention.1} parent=39 // pred_fallthru
          _
      $region40: #{boundless_rotated_space_intervention.1} parent=5 // pred_fallthru
        _
    $region6: #{boundless_rotated_space_intervention.1} parent=1 // loop_footer
      %s16 = sadd.s32 1, %s12
    $region7: #{boundless_rotated_space_intervention.1} parent=1 // loop_footer_branch
      %11 = sbr.rel target = $region3
    $region8: #{boundless_rotated_space_intervention.1} parent=1 // loop_exit
      _
    %306 = vsyncpa [#allocation3], 1
    %s307 = scalar_lea.sflag [#allocation3], 1
    %308 = vsyncpa %s307, 1

</llo_original>
